<compile_context>
chip_gen: v7x
topology: tpu7x:2x2x1
jax: 0.10.0
libtpu: 0.0.40
codegen_flags: <defaults>
</compile_context>

<pallas_src>
import jax
import jax.numpy as jnp
from jax.experimental import pallas as pl
from jax.experimental.pallas import tpu as pltpu

SELU_ALPHA = 1.6732632423543772848170429916717
SELU_SCALE = 1.0507009873554804934193349852946

_IN_FEATS = 16 * 49          # 784, flattened (channel-major, length-minor) input
_HID_PAD = 128               # 91 real hidden features, padded to 128 lanes
_CLS_PAD = 128               # 10 real classes,        padded to 128 lanes
_NEG_BIG = -1e30             # padded-class bias -> contributes exactly 0 to softmax


def _forward_kernel(x_ref, wpre_ref, w5t_ref, b5_ref, out_ref):
    # Fused conv0 + conv1 + f2 + f3:  (TB, 784) @ (784, 128)  (cols 91.. are zero)
    h = jnp.dot(x_ref[...], wpre_ref[...], preferred_element_type=jnp.float32)

    # SELU (exact on the zero-padded hidden lanes: SELU(0) == 0)
    h = SELU_SCALE * jnp.where(h > 0.0, h, SELU_ALPHA * (jnp.exp(h) - 1.0))

    # Linear 91 -> 10 with bias, lane-padded to 128 output classes.
    logits = jnp.dot(h, w5t_ref[...], preferred_element_type=jnp.float32) + b5_ref[...]

    # LogSoftmax over dim 1.  Padded class lanes hold -1e30 -> exp underflows to 0,
    # so max / logsumexp are exactly those of the 10 real classes.
    m = jnp.max(logits, axis=1, keepdims=True)
    s = logits - m
    lse = jnp.log(jnp.sum(jnp.exp(s), axis=1, keepdims=True))
    out_ref[...] = s - lse


def _round_up(n, m):
    return ((n + m - 1) // m) * m


def conv1d_then_linear_76(x, params, *, block_b=512):
    """x: (B, 16, 49) (or any view with 16*49 trailing elements), float32.
    Returns (B, 10) log-probabilities."""
    B = x.shape[0]
    x = x.reshape(B, _IN_FEATS).astype(jnp.float32)          # (B, 784)

    w0 = params["w0"].astype(jnp.float32)   # (19, 16, 48)  Conv1d(16,19,k=48)
    w1 = params["w1"].astype(jnp.float32)   # (10, 19, 2)   Conv1d(19,10,k=2)
    w2 = params["w2"].astype(jnp.float32)   # (111, 10)     Linear(10,111)
    w3 = params["w3"].astype(jnp.float32)   # (91, 111)     Linear(111,91)
    w5 = params["w5"].astype(jnp.float32)   # (10, 91)      Linear(91,10)
    b5 = params["b5"].astype(jnp.float32)   # (10,)

    # ---- Fold conv0 + conv1 into a single (784, 10) matrix --------------------
    # z[:, p] = sum_{c,l} x[:, c, l] * Wc[c, l, p]
    #   Wc[c, l, p] = sum_o w0[o, c, l]   * w1[p, o, 0]   (valid for l in 0..47)
    #              + sum_o w0[o, c, l-1] * w1[p, o, 1]   (valid for l in 1..48)
    tap0 = jnp.einsum("ock,po->ckp", w0, w1[:, :, 0])         # (16, 48, 10)
    tap1 = jnp.einsum("ock,po->ckp", w0, w1[:, :, 1])         # (16, 48, 10)
    w_comb = jnp.zeros((16, 49, 10), jnp.float32)
    w_comb = w_comb.at[:, 0:48, :].add(tap0)
    w_comb = w_comb.at[:, 1:49, :].add(tap1)
    w_comb = w_comb.reshape(_IN_FEATS, 10)                    # (784, 10)

    # ---- Fold f2 and f3 (pre-SELU linears):  (784, 91), lane-pad to 128 -------
    w_pre = w_comb @ w2.T @ w3.T                              # (784, 91)
    w_pre_p = jnp.zeros((_IN_FEATS, _HID_PAD), jnp.float32).at[:, :91].set(w_pre)

    # ---- f5 weights / bias, lane-padded -----------------------------------------
    w5t_p = jnp.zeros((_HID_PAD, _CLS_PAD), jnp.float32).at[:91, :10].set(w5.T)
    b5_p = jnp.full((1, _CLS_PAD), _NEG_BIG, jnp.float32).at[0, :10].set(b5)

    # ---- Batch tiling -----------------------------------------------------------
    tb = min(block_b, _round_up(B, 8))
    b_pad = _round_up(B, tb)
    if b_pad != B:
        x = jnp.pad(x, ((0, b_pad - B), (0, 0)))              # zero rows -> harmless

    grid = (b_pad // tb,)

    out = pl.pallas_call(
        _forward_kernel,
        out_shape=jax.ShapeDtypeStruct((b_pad, _CLS_PAD), jnp.float32),
        grid_spec=pltpu.PrefetchScalarGridSpec(
            num_scalar_prefetch=0,
            grid=grid,
            in_specs=[
                pl.BlockSpec((tb, _IN_FEATS), lambda i: (i, 0)),        # streamed
                pl.BlockSpec((_IN_FEATS, _HID_PAD), lambda i: (0, 0)),  # resident
                pl.BlockSpec((_HID_PAD, _CLS_PAD), lambda i: (0, 0)),   # resident
                pl.BlockSpec((1, _CLS_PAD), lambda i: (0, 0)),          # resident
            ],
            out_specs=pl.BlockSpec((tb, _CLS_PAD), lambda i: (i, 0)),
        ),
        compiler_params=pltpu.CompilerParams(
            dimension_semantics=("parallel",)),
    )(x, w_pre_p, w5t_p, b5_p)

    return out[:B, :10]


def init_params(key):
    """Deterministic parameter init matching the PyTorch module's shapes."""
    ks = jax.random.split(key, 6)

    def u(k, shape, fan_in):
        bound = 1.0 / jnp.sqrt(fan_in)
        return jax.random.uniform(k, shape, jnp.float32, -bound, bound)

    return {
        "w0": u(ks[0], (19, 16, 48), 16 * 48),   # Conv1d(16,19,k=48), bias=False
        "w1": u(ks[1], (10, 19, 2), 19 * 2),     # Conv1d(19,10,k=2),  bias=False
        "w2": u(ks[2], (111, 10), 10),           # Linear(10,111),     bias=False
        "w3": u(ks[3], (91, 111), 111),          # Linear(111,91),     bias=False
        "w5": u(ks[4], (10, 91), 91),            # Linear(91,10)
        "b5": u(ks[5], (10,), 91),               # Linear(91,10) bias
    }


def _reference(x, params):
    """Pure-JAX reference of the unfused forward, for a sanity check."""
    B = x.shape[0]
    x = x.reshape(B, 16, 49).astype(jnp.float32)
    # conv0 (16->19, k=48): output length 2
    y = jnp.stack(
        [jnp.einsum("bck,ock->bo", x[:, :, t:t + 48], params["w0"]) for t in range(2)],
        axis=-1)                                              # (B, 19, 2)
    # conv1 (19->10, k=2): output length 1
    z = jnp.einsum("bct,oct->bo", y, params["w1"])            # (B, 10)
    h = z @ params["w2"].T
    h = h @ params["w3"].T
    h = SELU_SCALE * jnp.where(h > 0, h, SELU_ALPHA * (jnp.exp(h) - 1.0))
    logits = h @ params["w5"].T + params["b5"]
    return jax.nn.log_softmax(logits, axis=1)


if __name__ == "__main__":
    key = jax.random.PRNGKey(0)
    k_x, k_p = jax.random.split(key)

    B = 2
    x = jax.random.normal(k_x, (B, 16, 49), jnp.float32)
    params = init_params(k_p)

    out = conv1d_then_linear_76(x, params)
    out = jax.block_until_ready(out)

    ref = _reference(x, params)
    assert out.shape == (B, 10)
    assert jnp.allclose(out, ref, atol=5e-4, rtol=5e-4), "mismatch vs reference"
    print("KERNEL_OK")
</pallas_src>

<mosaic_0001>
module attributes {stable_mosaic.version = 11 : i64} {
  func.func @_forward_kernel(%arg0: i32, %arg1: memref<8x784xf32, #tpu.memory_space<vmem>>, %arg2: memref<784x128xf32, #tpu.memory_space<vmem>>, %arg3: memref<128x128xf32, #tpu.memory_space<vmem>>, %arg4: memref<1x128xf32, #tpu.memory_space<vmem>>, %arg5: memref<8x128xf32, #tpu.memory_space<vmem>>) attributes {dimension_semantics = [#tpu.dimension_semantics<parallel>], iteration_bounds = array<i64: 1>, scalar_prefetch = 0 : i64, scratch_operands = 0 : i64, tpu.core_type = #tpu.core_type<tc>, window_params = [{transform_indices = @transform_0, window_bounds = array<i64: 8, 784>}, {pipeline_mode = #tpu.pipeline_mode<synchronous>, transform_indices = @transform_1, window_bounds = array<i64: 784, 128>}, {pipeline_mode = #tpu.pipeline_mode<synchronous>, transform_indices = @transform_2, window_bounds = array<i64: 128, 128>}, {pipeline_mode = #tpu.pipeline_mode<synchronous>, transform_indices = @transform_3, window_bounds = array<i64: 1, 128>}, {transform_indices = @transform_4, window_bounds = array<i64: 8, 128>}]} {
    %c0 = arith.constant 0 : index
    %c0_0 = arith.constant 0 : index
    %0 = vector.load %arg1[%c0, %c0_0] : memref<8x784xf32, #tpu.memory_space<vmem>>, vector<8x784xf32>
    %c0_1 = arith.constant 0 : index
    %c0_2 = arith.constant 0 : index
    %1 = vector.load %arg2[%c0_1, %c0_2] : memref<784x128xf32, #tpu.memory_space<vmem>>, vector<784x128xf32>
    %cst = arith.constant dense<0.000000e+00> : vector<8x128xf32>
    %2 = tpu.matmul %0, %1, %cst {dimension_numbers = #tpu.dot_dimension_numbers<[1], [0], [0], [1], [0, 0, 1, 1], [], []>} : vector<8x784xf32>, vector<784x128xf32>, vector<8x128xf32> -> vector<8x128xf32>
    %cst_3 = arith.constant 0.000000e+00 : f32
    %3 = vector.broadcast %cst_3 : f32 to vector<8x128xf32>
    %4 = arith.cmpf ogt, %2, %3 : vector<8x128xf32>
    %5 = math.exp %2 : vector<8x128xf32>
    %cst_4 = arith.constant 1.000000e+00 : f32
    %6 = vector.broadcast %cst_4 : f32 to vector<8x128xf32>
    %7 = arith.subf %5, %6 : vector<8x128xf32>
    %cst_5 = arith.constant 1.67326319 : f32
    %8 = vector.broadcast %cst_5 : f32 to vector<8x128xf32>
    %9 = arith.mulf %8, %7 : vector<8x128xf32>
    %10 = arith.select %4, %2, %9 : vector<8x128xi1>, vector<8x128xf32>
    %cst_6 = arith.constant 1.05070102 : f32
    %11 = vector.broadcast %cst_6 : f32 to vector<8x128xf32>
    %12 = arith.mulf %11, %10 : vector<8x128xf32>
    %c0_7 = arith.constant 0 : index
    %c0_8 = arith.constant 0 : index
    %13 = vector.load %arg3[%c0_7, %c0_8] : memref<128x128xf32, #tpu.memory_space<vmem>>, vector<128x128xf32>
    %cst_9 = arith.constant dense<0.000000e+00> : vector<8x128xf32>
    %14 = tpu.matmul %12, %13, %cst_9 {dimension_numbers = #tpu.dot_dimension_numbers<[1], [0], [0], [1], [0, 0, 1, 1], [], []>} : vector<8x128xf32>, vector<128x128xf32>, vector<8x128xf32> -> vector<8x128xf32>
    %c0_10 = arith.constant 0 : index
    %c0_11 = arith.constant 0 : index
    %15 = vector.load %arg4[%c0_10, %c0_11] : memref<1x128xf32, #tpu.memory_space<vmem>>, vector<1x128xf32>
    %16 = vector.broadcast %15 : vector<1x128xf32> to vector<8x128xf32>
    %17 = arith.addf %14, %16 : vector<8x128xf32>
    %cst_12 = arith.constant dense<0xFF800000> : vector<8xf32>
    %18 = vector.multi_reduction <maximumf>, %17, %cst_12 [1] : vector<8x128xf32> to vector<8xf32>
    %19 = vector.shape_cast %18 : vector<8xf32> to vector<8x1xf32>
    %20 = vector.broadcast %19 : vector<8x1xf32> to vector<8x128xf32>
    %21 = arith.subf %17, %20 : vector<8x128xf32>
    %22 = math.exp %21 : vector<8x128xf32>
    %cst_13 = arith.constant dense<0.000000e+00> : vector<8xf32>
    %23 = vector.multi_reduction <add>, %22, %cst_13 [1] : vector<8x128xf32> to vector<8xf32>
    %24 = vector.shape_cast %23 : vector<8xf32> to vector<8x1xf32>
    %25 = math.log %24 : vector<8x1xf32>
    %26 = vector.broadcast %25 : vector<8x1xf32> to vector<8x128xf32>
    %27 = arith.subf %21, %26 : vector<8x128xf32>
    %c0_14 = arith.constant 0 : index
    %c0_15 = arith.constant 0 : index
    %28 = vector.load %arg5[%c0_14, %c0_15] : memref<8x128xf32, #tpu.memory_space<vmem>>, vector<8x128xf32>
    tpu.vector_store %arg5[%c0_14, %c0_15], %27 {strides = array<i32>} : memref<8x128xf32, #tpu.memory_space<vmem>>, vector<8x128xf32>,
    return
  }
  func.func @transform_0(%arg0: i32) -> (i32, i32) {
    %c0_i32 = arith.constant 0 : i32
    %c0_i32_0 = arith.constant 0 : i32
    return %arg0, %c0_i32 : i32, i32
  }
  func.func @transform_1(%arg0: i32) -> (i32, i32) {
    %c0_i32 = arith.constant 0 : i32
    %c0_i32_0 = arith.constant 0 : i32
    %c0_i32_1 = arith.constant 0 : i32
    return %c0_i32, %c0_i32_0 : i32, i32
  }
  func.func @transform_2(%arg0: i32) -> (i32, i32) {
    %c0_i32 = arith.constant 0 : i32
    %c0_i32_0 = arith.constant 0 : i32
    %c0_i32_1 = arith.constant 0 : i32
    return %c0_i32, %c0_i32_0 : i32, i32
  }
  func.func @transform_3(%arg0: i32) -> (i32, i32) {
    %c0_i32 = arith.constant 0 : i32
    %c0_i32_0 = arith.constant 0 : i32
    %c0_i32_1 = arith.constant 0 : i32
    return %c0_i32, %c0_i32_0 : i32, i32
  }
  func.func @transform_4(%arg0: i32) -> (i32, i32) {
    %c0_i32 = arith.constant 0 : i32
    %c0_i32_0 = arith.constant 0 : i32
    return %arg0, %c0_i32 : i32, i32
  }
}

</mosaic_0001>

<llo_original>
// kernel: tpu_custom_call.1
$region0: #{tpu_custom_call.1}
  #allocation0 [shape = 'u32[]', space=smem, size = 0x4, offset = 0x4, fixed_abs, tag = 'smem constant byte address 0x4 - core index']
  #allocation1 [shape = 'u32[144,128]{1,0:T(1,128)}', space=vmem, size = 0x12000, scoped, tag = 'internal scratch']
  %s0 = inlined_call_operand.hbm [shape: f32[8,784], index: 0, kind: input, shape index: {}]
  %s1 = inlined_call_operand.hbm [shape: f32[784,128], index: 1, kind: input, shape index: {}]
  %s2 = inlined_call_operand.hbm [shape: f32[128,128], index: 2, kind: input, shape index: {}]
  %s3 = inlined_call_operand.vmem [shape: f32[1,128], index: 3, kind: input, shape index: {}]
  %s4 = inlined_call_operand.hbm [shape: f32[8,128], index: 4, kind: output, shape index: {}]
  %s5 = sld [smem:[#allocation0]]
  $region38: #{tpu_custom_call.1} parent=0
    _
  %s7 = ssub.s32 1, %s5
  %s8 = scalar_select 0, %s7, %s5
  $region1: #{tpu_custom_call.1} parent=0
    #allocation2 [shape = 'u8[28672]{0}', space=vmem, size = 0x7000, scoped, tag = 'input window, operand 0, single buffered']
    #allocation3 [shape = 's32[1]{0}', space=sflag, size = 0x4, scoped, tag = 'scoped memory for tpu_custom_call.1']
    #allocation4 [shape = 's32[1]{0}', space=sflag, size = 0x4, scoped, tag = 'scoped memory for tpu_custom_call.1']
    #allocation5 [shape = 'u8[401408]{0}', space=vmem, size = 0x62000, scoped, tag = 'input window, operand 1, single buffered']
    #allocation6 [shape = 's32[1]{0}', space=sflag, size = 0x4, scoped, tag = 'scoped memory for tpu_custom_call.1']
    #allocation7 [shape = 'u8[65536]{0}', space=vmem, size = 0x10000, scoped, tag = 'input window, operand 2, single buffered']
    #allocation8 [shape = 'u8[4096]{0}', space=vmem, size = 0x1000, scoped, tag = 'output window, operand 0, single buffered']
    %9 = vsyncpa [#allocation3], 0
    %10 = vsyncpa [#allocation6], 0
    %11 = vsyncpa [#allocation4], 0
    // Predicated region
    $region2: #{tpu_custom_call.1} parent=1 // pred_check
      _
    $region3: #{tpu_custom_call.1} parent=1 // pred_check_branch
      %13 = sbr.rel (0) target = $region5
    $region4: #{tpu_custom_call.1} parent=1 // pred_region
      %s15 = ssub.s32 896, 896
      %16 = vsyncadd [#allocation3], %s15
      %s18 = sshll.u32 [#allocation2], 4
      %s19 = int_to_ptr.vmem [resolvable:$true] %s18
      %21 = dma.hbm_to_vmem [thread:$0]  %s0, 896, %s19, [#allocation3]
    $region5: #{tpu_custom_call.1} parent=1 // pred_fallthru
      _
    // Predicated region
    $region6: #{tpu_custom_call.1} parent=1 // pred_check
      _
    $region7: #{tpu_custom_call.1} parent=1 // pred_check_branch
      %23 = sbr.rel (0) target = $region9
    $region8: #{tpu_custom_call.1} parent=1 // pred_region
      %s25 = ssub.s32 12544, 12544
      %26 = vsyncadd [#allocation6], %s25
      %s27 = sshll.u32 [#allocation5], 4
      %s28 = int_to_ptr.vmem [resolvable:$true] %s27
      %33 = dma.hbm_to_vmem [thread:$0]  %s1, 12544, %s28, [#allocation6], 128, 128, 8
    $region9: #{tpu_custom_call.1} parent=1 // pred_fallthru
      _
    // Predicated region
    $region10: #{tpu_custom_call.1} parent=1 // pred_check
      _
    $region11: #{tpu_custom_call.1} parent=1 // pred_check_branch
      %35 = sbr.rel (0) target = $region13
    $region12: #{tpu_custom_call.1} parent=1 // pred_region
      %s37 = ssub.s32 2048, 2048
      %38 = vsyncadd [#allocation6], %s37
      %s39 = sshll.u32 [#allocation7], 4
      %s40 = int_to_ptr.vmem [resolvable:$true] %s39
      %45 = dma.hbm_to_vmem [thread:$0]  %s2, 2048, %s40, [#allocation6], 128, 128, 8
    $region13: #{tpu_custom_call.1} parent=1 // pred_fallthru
      _
    // Predicated region
    $region14: #{tpu_custom_call.1} parent=1 // pred_check
      _
    $region15: #{tpu_custom_call.1} parent=1 // pred_check_branch
      %47 = sbr.rel (0) target = $region17
    $region16: #{tpu_custom_call.1} parent=1 // pred_region
      _
    $region17: #{tpu_custom_call.1} parent=1 // pred_fallthru
      _
    // Predicated region
    $region18: #{tpu_custom_call.1} parent=1 // pred_check
      _
    $region19: #{tpu_custom_call.1} parent=1 // pred_check_branch
      %49 = sbr.rel (0) target = $region21
    $region20: #{tpu_custom_call.1} parent=1 // pred_region
      %50 = dma.done [#allocation3], 896
    $region21: #{tpu_custom_call.1} parent=1 // pred_fallthru
      _
    // Predicated region
    $region22: #{tpu_custom_call.1} parent=1 // pred_check
      _
    $region23: #{tpu_custom_call.1} parent=1 // pred_check_branch
      %52 = sbr.rel (0) target = $region25
    $region24: #{tpu_custom_call.1} parent=1 // pred_region
      %53 = dma.done [#allocation6], 12544
    $region25: #{tpu_custom_call.1} parent=1 // pred_fallthru
      _
    // Predicated region
    $region26: #{tpu_custom_call.1} parent=1 // pred_check
      _
    $region27: #{tpu_custom_call.1} parent=1 // pred_check_branch
      %55 = sbr.rel (0) target = $region29
    $region28: #{tpu_custom_call.1} parent=1 // pred_region
      %56 = dma.done [#allocation6], 2048
    $region29: #{tpu_custom_call.1} parent=1 // pred_fallthru
      _
    %v57 = vld [vmem:[#allocation2] sm:$0xff]
    %v58 = vld [vmem:[#allocation2 + $0x8] sm:$0xff]
    %v59 = vld [vmem:[#allocation2 + $0x10] sm:$0xff]
    %v60 = vld [vmem:[#allocation2 + $0x18] sm:$0xff]
    %v61 = vld [vmem:[#allocation2 + $0x20] sm:$0xff]
    %v62 = vld [vmem:[#allocation2 + $0x28] sm:$0xff]
    %v63 = vld [vmem:[#allocation2 + $0x30] sm:$0xff]
    %v64 = vld [vmem:[#allocation5] sm:$0xff]
    %v65 = vld [vmem:[#allocation5 + $0x8] sm:$0xff]
    %v66 = vld [vmem:[#allocation5 + $0x10] sm:$0xff]
    %v67 = vld [vmem:[#allocation5 + $0x18] sm:$0xff]
    %v68 = vld [vmem:[#allocation5 + $0x20] sm:$0xff]
    %v69 = vld [vmem:[#allocation5 + $0x28] sm:$0xff]
    %v70 = vld [vmem:[#allocation5 + $0x30] sm:$0xff]
    %v71 = vld [vmem:[#allocation5 + $0x38] sm:$0xff]
    %v72 = vld [vmem:[#allocation5 + $0x40] sm:$0xff]
    %v73 = vld [vmem:[#allocation5 + $0x48] sm:$0xff]
    %v74 = vld [vmem:[#allocation5 + $0x50] sm:$0xff]
    %v75 = vld [vmem:[#allocation5 + $0x58] sm:$0xff]
    %v76 = vld [vmem:[#allocation5 + $0x60] sm:$0xff]
    %v77 = vld [vmem:[#allocation5 + $0x68] sm:$0xff]
    %v78 = vld [vmem:[#allocation5 + $0x70] sm:$0xff]
    %v79 = vld [vmem:[#allocation5 + $0x78] sm:$0xff]
    %v80 = vld [vmem:[#allocation5 + $0x80] sm:$0xff]
    %v81 = vld [vmem:[#allocation5 + $0x88] sm:$0xff]
    %v82 = vld [vmem:[#allocation5 + $0x90] sm:$0xff]
    %v83 = vld [vmem:[#allocation5 + $0x98] sm:$0xff]
    %v84 = vld [vmem:[#allocation5 + $0xa0] sm:$0xff]
    %v85 = vld [vmem:[#allocation5 + $0xa8] sm:$0xff]
    %v86 = vld [vmem:[#allocation5 + $0xb0] sm:$0xff]
    %v87 = vld [vmem:[#allocation5 + $0xb8] sm:$0xff]
    %v88 = vld [vmem:[#allocation5 + $0xc0] sm:$0xff]
    %v89 = vld [vmem:[#allocation5 + $0xc8] sm:$0xff]
    %v90 = vld [vmem:[#allocation5 + $0xd0] sm:$0xff]
    %v91 = vld [vmem:[#allocation5 + $0xd8] sm:$0xff]
    %v92 = vld [vmem:[#allocation5 + $0xe0] sm:$0xff]
    %v93 = vld [vmem:[#allocation5 + $0xe8] sm:$0xff]
    %v94 = vld [vmem:[#allocation5 + $0xf0] sm:$0xff]
    %v95 = vld [vmem:[#allocation5 + $0xf8] sm:$0xff]
    %v96 = vld [vmem:[#allocation5 + $0x100] sm:$0xff]
    %v97 = vld [vmem:[#allocation5 + $0x108] sm:$0xff]
    %v98 = vld [vmem:[#allocation5 + $0x110] sm:$0xff]
    %v99 = vld [vmem:[#allocation5 + $0x118] sm:$0xff]
    %v100 = vld [vmem:[#allocation5 + $0x120] sm:$0xff]
    %v101 = vld [vmem:[#allocation5 + $0x128] sm:$0xff]
    %v102 = vld [vmem:[#allocation5 + $0x130] sm:$0xff]
    %v103 = vld [vmem:[#allocation5 + $0x138] sm:$0xff]
    %v104 = vld [vmem:[#allocation5 + $0x140] sm:$0xff]
    %v105 = vld [vmem:[#allocation5 + $0x148] sm:$0xff]
    %v106 = vld [vmem:[#allocation5 + $0x150] sm:$0xff]
    %v107 = vld [vmem:[#allocation5 + $0x158] sm:$0xff]
    %v108 = vld [vmem:[#allocation5 + $0x160] sm:$0xff]
    %v109 = vld [vmem:[#allocation5 + $0x168] sm:$0xff]
    %v110 = vld [vmem:[#allocation5 + $0x170] sm:$0xff]
    %v111 = vld [vmem:[#allocation5 + $0x178] sm:$0xff]
    %v112 = vld [vmem:[#allocation5 + $0x180] sm:$0xff]
    %v113 = vld [vmem:[#allocation5 + $0x188] sm:$0xff]
    %v114 = vld [vmem:[#allocation5 + $0x190] sm:$0xff]
    %v115 = vld [vmem:[#allocation5 + $0x198] sm:$0xff]
    %v116 = vld [vmem:[#allocation5 + $0x1a0] sm:$0xff]
    %v117 = vld [vmem:[#allocation5 + $0x1a8] sm:$0xff]
    %v118 = vld [vmem:[#allocation5 + $0x1b0] sm:$0xff]
    %v119 = vld [vmem:[#allocation5 + $0x1b8] sm:$0xff]
    %v120 = vld [vmem:[#allocation5 + $0x1c0] sm:$0xff]
    %v121 = vld [vmem:[#allocation5 + $0x1c8] sm:$0xff]
    %v122 = vld [vmem:[#allocation5 + $0x1d0] sm:$0xff]
    %v123 = vld [vmem:[#allocation5 + $0x1d8] sm:$0xff]
    %v124 = vld [vmem:[#allocation5 + $0x1e0] sm:$0xff]
    %v125 = vld [vmem:[#allocation5 + $0x1e8] sm:$0xff]
    %v126 = vld [vmem:[#allocation5 + $0x1f0] sm:$0xff]
    %v127 = vld [vmem:[#allocation5 + $0x1f8] sm:$0xff]
    %v128 = vld [vmem:[#allocation5 + $0x200] sm:$0xff]
    %v129 = vld [vmem:[#allocation5 + $0x208] sm:$0xff]
    %v130 = vld [vmem:[#allocation5 + $0x210] sm:$0xff]
    %v131 = vld [vmem:[#allocation5 + $0x218] sm:$0xff]
    %v132 = vld [vmem:[#allocation5 + $0x220] sm:$0xff]
    %v133 = vld [vmem:[#allocation5 + $0x228] sm:$0xff]
    %v134 = vld [vmem:[#allocation5 + $0x230] sm:$0xff]
    %v135 = vld [vmem:[#allocation5 + $0x238] sm:$0xff]
    %v136 = vld [vmem:[#allocation5 + $0x240] sm:$0xff]
    %v137 = vld [vmem:[#allocation5 + $0x248] sm:$0xff]
    %v138 = vld [vmem:[#allocation5 + $0x250] sm:$0xff]
    %v139 = vld [vmem:[#allocation5 + $0x258] sm:$0xff]
    %v140 = vld [vmem:[#allocation5 + $0x260] sm:$0xff]
    %v141 = vld [vmem:[#allocation5 + $0x268] sm:$0xff]
    %v142 = vld [vmem:[#allocation5 + $0x270] sm:$0xff]
    %v143 = vld [vmem:[#allocation5 + $0x278] sm:$0xff]
    %v144 = vld [vmem:[#allocation5 + $0x280] sm:$0xff]
    %v145 = vld [vmem:[#allocation5 + $0x288] sm:$0xff]
    %v146 = vld [vmem:[#allocation5 + $0x290] sm:$0xff]
    %v147 = vld [vmem:[#allocation5 + $0x298] sm:$0xff]
    %v148 = vld [vmem:[#allocation5 + $0x2a0] sm:$0xff]
    %v149 = vld [vmem:[#allocation5 + $0x2a8] sm:$0xff]
    %v150 = vld [vmem:[#allocation5 + $0x2b0] sm:$0xff]
    %v151 = vld [vmem:[#allocation5 + $0x2b8] sm:$0xff]
    %v152 = vld [vmem:[#allocation5 + $0x2c0] sm:$0xff]
    %v153 = vld [vmem:[#allocation5 + $0x2c8] sm:$0xff]
    %v154 = vld [vmem:[#allocation5 + $0x2d0] sm:$0xff]
    %v155 = vld [vmem:[#allocation5 + $0x2d8] sm:$0xff]
    %v156 = vld [vmem:[#allocation5 + $0x2e0] sm:$0xff]
    %v157 = vld [vmem:[#allocation5 + $0x2e8] sm:$0xff]
    %v158 = vld [vmem:[#allocation5 + $0x2f0] sm:$0xff]
    %v159 = vld [vmem:[#allocation5 + $0x2f8] sm:$0xff]
    %v160 = vld [vmem:[#allocation5 + $0x300] sm:$0xff]
    %v161 = vld [vmem:[#allocation5 + $0x308] sm:$0xff]
    %vm162 = vcmask 130048
    %v164 = vsel %vm162, %v63, 0
    %166 = vmatprep.subr.mxu0 0.0
    %167 = vmatpush1.msra.mxu0 %v64
    %168 = vmatprep.subr.mxu0 0.0
    %169 = vmatpush1.msra.mxu0 %v65
    %170 = vmatprep.subr.mxu0 0.0
    %171 = vmatpush1.msra.mxu0 %v66
    %172 = vmatprep.subr.mxu0 0.0
    %173 = vmatpush1.msra.mxu0 %v67
    %174 = vmatprep.subr.mxu0 0.0
    %175 = vmatpush1.msra.mxu0 %v68
    %176 = vmatprep.subr.mxu0 0.0
    %177 = vmatpush1.msra.mxu0 %v69
    %178 = vmatprep.subr.mxu0 0.0
    %179 = vmatpush1.msra.mxu0 %v70
    %180 = vmatprep.subr.mxu0 0.0
    %181 = vmatpush1.msra.mxu0 %v71
    %182 = vmatprep.subr.mxu0 0.0
    %183 = vmatpush1.msra.mxu0 %v72
    %184 = vmatprep.subr.mxu0 0.0
    %185 = vmatpush1.msra.mxu0 %v73
    %186 = vmatprep.subr.mxu0 0.0
    %187 = vmatpush1.msra.mxu0 %v74
    %188 = vmatprep.subr.mxu0 0.0
    %189 = vmatpush1.msra.mxu0 %v75
    %190 = vmatprep.subr.mxu0 0.0
    %191 = vmatpush1.msra.mxu0 %v76
    %192 = vmatprep.subr.mxu0 0.0
    %193 = vmatpush1.msra.mxu0 %v77
    %194 = vmatprep.subr.mxu0 0.0
    %195 = vmatpush1.msra.mxu0 %v78
    %196 = vmatprep.subr.mxu0 0.0
    %197 = vmatpush1.msra.mxu0 %v79
    %198 = vmatprep.subr.mxu0 0.0
    %199 = vmatpush1.msra.mxu0 %v80
    %200 = vmatprep.subr.mxu0 0.0
    %201 = vmatpush1.msra.mxu0 %v81
    %202 = vmatprep.subr.mxu0 0.0
    %203 = vmatpush1.msra.mxu0 %v82
    %204 = vmatprep.subr.mxu0 0.0
    %205 = vmatpush1.msra.mxu0 %v83
    %206 = vmatprep.subr.mxu0 0.0
    %207 = vmatpush1.msra.mxu0 %v84
    %208 = vmatprep.subr.mxu0 0.0
    %209 = vmatpush1.msra.mxu0 %v85
    %210 = vmatprep.subr.mxu0 0.0
    %211 = vmatpush1.msra.mxu0 %v86
    %212 = vmatprep.subr.mxu0 0.0
    %213 = vmatpush1.msra.mxu0 %v87
    %214 = vmatprep.subr.mxu0 0.0
    %215 = vmatpush1.msra.mxu0 %v88
    %216 = vmatprep.subr.mxu0 0.0
    %217 = vmatpush1.msra.mxu0 %v89
    %218 = vmatprep.subr.mxu0 0.0
    %219 = vmatpush1.msra.mxu0 %v90
    %220 = vmatprep.subr.mxu0 0.0
    %221 = vmatpush1.msra.mxu0 %v91
    %222 = vmatprep.subr.mxu0 0.0
    %223 = vmatpush1.msra.mxu0 %v92
    %224 = vmatprep.subr.mxu0 0.0
    %225 = vmatpush1.msra.mxu0 %v93
    %226 = vmatprep.subr.mxu0 0.0
    %227 = vmatpush1.msra.mxu0 %v94
    %228 = vmatprep.subr.mxu0 0.0
    %229 = vmatpush1.msra.mxu0 %v95
    %230 = vmatprep.mubr.f32.mxu0 %v58
    %231 = vmatmul.mubr.f32.gmra.mrb[0].mxu0 %v57
    %v232 = vpop.f32.mrb[0].mxu0
    %v233 = vadd.f32 0.0, %v232
    %v234 = vpop.f32.mrb[0].mxu0
    %235 = vdwg.mxu0
    %236 = vmatprep.subr.mxu0 0.0
    %237 = vmatpush1.msra.mxu0 %v96
    %238 = vmatprep.subr.mxu0 0.0
    %239 = vmatpush1.msra.mxu0 %v97
    %240 = vmatprep.subr.mxu0 0.0
    %241 = vmatpush1.msra.mxu0 %v98
    %242 = vmatprep.subr.mxu0 0.0
    %243 = vmatpush1.msra.mxu0 %v99
    %244 = vmatprep.subr.mxu0 0.0
    %245 = vmatpush1.msra.mxu0 %v100
    %246 = vmatprep.subr.mxu0 0.0
    %247 = vmatpush1.msra.mxu0 %v101
    %248 = vmatprep.subr.mxu0 0.0
    %249 = vmatpush1.msra.mxu0 %v102
    %250 = vmatprep.subr.mxu0 0.0
    %251 = vmatpush1.msra.mxu0 %v103
    %252 = vmatprep.subr.mxu0 0.0
    %253 = vmatpush1.msra.mxu0 %v104
    %254 = vmatprep.subr.mxu0 0.0
    %255 = vmatpush1.msra.mxu0 %v105
    %256 = vmatprep.subr.mxu0 0.0
    %257 = vmatpush1.msra.mxu0 %v106
    %258 = vmatprep.subr.mxu0 0.0
    %259 = vmatpush1.msra.mxu0 %v107
    %260 = vmatprep.subr.mxu0 0.0
    %261 = vmatpush1.msra.mxu0 %v108
    %262 = vmatprep.subr.mxu0 0.0
    %263 = vmatpush1.msra.mxu0 %v109
    %264 = vmatprep.subr.mxu0 0.0
    %265 = vmatpush1.msra.mxu0 %v110
    %266 = vmatprep.subr.mxu0 0.0
    %267 = vmatpush1.msra.mxu0 %v111
    %268 = vmatprep.subr.mxu0 0.0
    %269 = vmatpush1.msra.mxu0 %v112
    %270 = vmatprep.subr.mxu0 0.0
    %271 = vmatpush1.msra.mxu0 %v113
    %272 = vmatprep.subr.mxu0 0.0
    %273 = vmatpush1.msra.mxu0 %v114
    %274 = vmatprep.subr.mxu0 0.0
    %275 = vmatpush1.msra.mxu0 %v115
    %276 = vmatprep.subr.mxu0 0.0
    %277 = vmatpush1.msra.mxu0 %v116
    %278 = vmatprep.subr.mxu0 0.0
    %279 = vmatpush1.msra.mxu0 %v117
    %280 = vmatprep.subr.mxu0 0.0
    %281 = vmatpush1.msra.mxu0 %v118
    %282 = vmatprep.subr.mxu0 0.0
    %283 = vmatpush1.msra.mxu0 %v119
    %284 = vmatprep.subr.mxu0 0.0
    %285 = vmatpush1.msra.mxu0 %v120
    %286 = vmatprep.subr.mxu0 0.0
    %287 = vmatpush1.msra.mxu0 %v121
    %288 = vmatprep.subr.mxu0 0.0
    %289 = vmatpush1.msra.mxu0 %v122
    %290 = vmatprep.subr.mxu0 0.0
    %291 = vmatpush1.msra.mxu0 %v123
    %292 = vmatprep.subr.mxu0 0.0
    %293 = vmatpush1.msra.mxu0 %v124
    %294 = vmatprep.subr.mxu0 0.0
    %295 = vmatpush1.msra.mxu0 %v125
    %296 = vmatprep.subr.mxu0 0.0
    %297 = vmatpush1.msra.mxu0 %v126
    %298 = vmatprep.subr.mxu0 0.0
    %299 = vmatpush1.msra.mxu0 %v127
    %300 = vmatprep.mubr.f32.mxu0 %v60
    %301 = vmatmul.mubr.f32.gmra.mrb[0].mxu0 %v59
    %v302 = vpop.f32.mrb[0].mxu0
    %v303 = vadd.f32 %v233, %v302
    %v304 = vpop.f32.mrb[0].mxu0
    %305 = vdwg.mxu0
    %306 = vmatprep.subr.mxu0 0.0
    %307 = vmatpush1.msra.mxu0 %v128
    %308 = vmatprep.subr.mxu0 0.0
    %309 = vmatpush1.msra.mxu0 %v129
    %310 = vmatprep.subr.mxu0 0.0
    %311 = vmatpush1.msra.mxu0 %v130
    %312 = vmatprep.subr.mxu0 0.0
    %313 = vmatpush1.msra.mxu0 %v131
    %314 = vmatprep.subr.mxu0 0.0
    %315 = vmatpush1.msra.mxu0 %v132
    %316 = vmatprep.subr.mxu0 0.0
    %317 = vmatpush1.msra.mxu0 %v133
    %318 = vmatprep.subr.mxu0 0.0
    %319 = vmatpush1.msra.mxu0 %v134
    %320 = vmatprep.subr.mxu0 0.0
    %321 = vmatpush1.msra.mxu0 %v135
    %322 = vmatprep.subr.mxu0 0.0
    %323 = vmatpush1.msra.mxu0 %v136
    %324 = vmatprep.subr.mxu0 0.0
    %325 = vmatpush1.msra.mxu0 %v137
    %326 = vmatprep.subr.mxu0 0.0
    %327 = vmatpush1.msra.mxu0 %v138
    %328 = vmatprep.subr.mxu0 0.0
    %329 = vmatpush1.msra.mxu0 %v139
    %330 = vmatprep.subr.mxu0 0.0
    %331 = vmatpush1.msra.mxu0 %v140
    %332 = vmatprep.subr.mxu0 0.0
    %333 = vmatpush1.msra.mxu0 %v141
    %334 = vmatprep.subr.mxu0 0.0
    %335 = vmatpush1.msra.mxu0 %v142
    %336 = vmatprep.subr.mxu0 0.0
    %337 = vmatpush1.msra.mxu0 %v143
    %338 = vmatprep.subr.mxu0 0.0
    %339 = vmatpush1.msra.mxu0 %v144
    %340 = vmatprep.subr.mxu0 0.0
    %341 = vmatpush1.msra.mxu0 %v145
    %342 = vmatprep.subr.mxu0 0.0
    %343 = vmatpush1.msra.mxu0 %v146
    %344 = vmatprep.subr.mxu0 0.0
    %345 = vmatpush1.msra.mxu0 %v147
    %346 = vmatprep.subr.mxu0 0.0
    %347 = vmatpush1.msra.mxu0 %v148
    %348 = vmatprep.subr.mxu0 0.0
    %349 = vmatpush1.msra.mxu0 %v149
    %350 = vmatprep.subr.mxu0 0.0
    %351 = vmatpush1.msra.mxu0 %v150
    %352 = vmatprep.subr.mxu0 0.0
    %353 = vmatpush1.msra.mxu0 %v151
    %354 = vmatprep.subr.mxu0 0.0
    %355 = vmatpush1.msra.mxu0 %v152
    %356 = vmatprep.subr.mxu0 0.0
    %357 = vmatpush1.msra.mxu0 %v153
    %358 = vmatprep.subr.mxu0 0.0
    %359 = vmatpush1.msra.mxu0 %v154
    %360 = vmatprep.subr.mxu0 0.0
    %361 = vmatpush1.msra.mxu0 %v155
    %362 = vmatprep.subr.mxu0 0.0
    %363 = vmatpush1.msra.mxu0 %v156
    %364 = vmatprep.subr.mxu0 0.0
    %365 = vmatpush1.msra.mxu0 %v157
    %366 = vmatprep.subr.mxu0 0.0
    %367 = vmatpush1.msra.mxu0 %v158
    %368 = vmatprep.subr.mxu0 0.0
    %369 = vmatpush1.msra.mxu0 %v159
    %370 = vmatprep.mubr.f32.mxu0 %v62
    %371 = vmatmul.mubr.f32.gmra.mrb[0].mxu0 %v61
    %v372 = vpop.f32.mrb[0].mxu0
    %v373 = vadd.f32 %v303, %v372
    %v374 = vpop.f32.mrb[0].mxu0
    %375 = vdwg.mxu0
    %376 = vmatprep.subr.mxu0 0.0
    %377 = vmatpush1.msra.mxu0 %v160
    %378 = vmatprep.subr.mxu0 0.0
    %379 = vmatpush1.msra.mxu0 %v161
    %380 = vmatprep.subr.mxu0 0.0
    %381 = vmatpush1.msra.mxu0 0.0
    %382 = vmatprep.subr.mxu0 0.0
    %383 = vmatpush1.msra.mxu0 0.0
    %384 = vmatprep.subr.mxu0 0.0
    %385 = vmatpush1.msra.mxu0 0.0
    %386 = vmatprep.subr.mxu0 0.0
    %387 = vmatpush1.msra.mxu0 0.0
    %388 = vmatprep.subr.mxu0 0.0
    %389 = vmatpush1.msra.mxu0 0.0
    %390 = vmatprep.subr.mxu0 0.0
    %391 = vmatpush1.msra.mxu0 0.0
    %392 = vmatprep.subr.mxu0 0.0
    %393 = vmatpush1.msra.mxu0 0.0
    %394 = vmatprep.subr.mxu0 0.0
    %395 = vmatpush1.msra.mxu0 0.0
    %396 = vmatprep.subr.mxu0 0.0
    %397 = vmatpush1.msra.mxu0 0.0
    %398 = vmatprep.subr.mxu0 0.0
    %399 = vmatpush1.msra.mxu0 0.0
    %400 = vmatprep.subr.mxu0 0.0
    %401 = vmatpush1.msra.mxu0 0.0
    %402 = vmatprep.subr.mxu0 0.0
    %403 = vmatpush1.msra.mxu0 0.0
    %404 = vmatprep.subr.mxu0 0.0
    %405 = vmatpush1.msra.mxu0 0.0
    %406 = vmatprep.subr.mxu0 0.0
    %407 = vmatpush1.msra.mxu0 0.0
    %408 = vmatprep.subr.mxu0 0.0
    %409 = vmatpush1.msra.mxu0 0.0
    %410 = vmatprep.subr.mxu0 0.0
    %411 = vmatpush1.msra.mxu0 0.0
    %412 = vmatprep.subr.mxu0 0.0
    %413 = vmatpush1.msra.mxu0 0.0
    %414 = vmatprep.subr.mxu0 0.0
    %415 = vmatpush1.msra.mxu0 0.0
    %416 = vmatprep.subr.mxu0 0.0
    %417 = vmatpush1.msra.mxu0 0.0
    %418 = vmatprep.subr.mxu0 0.0
    %419 = vmatpush1.msra.mxu0 0.0
    %420 = vmatprep.subr.mxu0 0.0
    %421 = vmatpush1.msra.mxu0 0.0
    %422 = vmatprep.subr.mxu0 0.0
    %423 = vmatpush1.msra.mxu0 0.0
    %424 = vmatprep.subr.mxu0 0.0
    %425 = vmatpush1.msra.mxu0 0.0
    %426 = vmatprep.subr.mxu0 0.0
    %427 = vmatpush1.msra.mxu0 0.0
    %428 = vmatprep.subr.mxu0 0.0
    %429 = vmatpush1.msra.mxu0 0.0
    %430 = vmatprep.subr.mxu0 0.0
    %431 = vmatpush1.msra.mxu0 0.0
    %432 = vmatprep.subr.mxu0 0.0
    %433 = vmatpush1.msra.mxu0 0.0
    %434 = vmatprep.subr.mxu0 0.0
    %435 = vmatpush1.msra.mxu0 0.0
    %436 = vmatprep.subr.mxu0 0.0
    %437 = vmatpush1.msra.mxu0 0.0
    %438 = vmatprep.subr.mxu0 0.0
    %439 = vmatpush1.msra.mxu0 0.0
    %440 = vmatprep.mubr.f32.mxu0 0.0
    %441 = vmatmul.mubr.f32.gmra.mrb[0].mxu0 %v164
    %v442 = vpop.f32.mrb[0].mxu0
    %v443 = vadd.f32 %v373, %v442
    %v444 = vpop.f32.mrb[0].mxu0
    %445 = vdwg.mxu0
    %vm446 = vcmp.gt.f32.partialorder %v443, 0.0
    %v447 = vmul.f32 %v443, 1.442695
    %v448 = vpow.pop %v447
    %v449 = vsub.f32 %v448, 1.0
    %v450 = vmul.f32 %v449, 1.6732632
    %v451 = vsel %vm446, %v443, %v450
    %v452 = vmul.f32 %v451, 1.050701
    %v453 = vld [vmem:[#allocation7] sm:$0xff]
    %v454 = vld [vmem:[#allocation7 + $0x8] sm:$0xff]
    %v455 = vld [vmem:[#allocation7 + $0x10] sm:$0xff]
    %v456 = vld [vmem:[#allocation7 + $0x18] sm:$0xff]
    %v457 = vld [vmem:[#allocation7 + $0x20] sm:$0xff]
    %v458 = vld [vmem:[#allocation7 + $0x28] sm:$0xff]
    %v459 = vld [vmem:[#allocation7 + $0x30] sm:$0xff]
    %v460 = vld [vmem:[#allocation7 + $0x38] sm:$0xff]
    %v461 = vld [vmem:[#allocation7 + $0x40] sm:$0xff]
    %v462 = vld [vmem:[#allocation7 + $0x48] sm:$0xff]
    %v463 = vld [vmem:[#allocation7 + $0x50] sm:$0xff]
    %v464 = vld [vmem:[#allocation7 + $0x58] sm:$0xff]
    %v465 = vld [vmem:[#allocation7 + $0x60] sm:$0xff]
    %v466 = vld [vmem:[#allocation7 + $0x68] sm:$0xff]
    %v467 = vld [vmem:[#allocation7 + $0x70] sm:$0xff]
    %v468 = vld [vmem:[#allocation7 + $0x78] sm:$0xff]
    %v469 = vld [vmem:[%s3] sm:$0x1]
    %v471 = vlaneseq
    %v472 = vshrl.u32 %v471, 7
    %v473 = vsub.s32 0, %v472
    %v474 = vrot.slane %v469, %v473
    %476 = vmatprep.subr.mxu0 0.0
    %477 = vmatpush1.msra.mxu0 %v453
    %478 = vmatprep.subr.mxu0 0.0
    %479 = vmatpush1.msra.mxu0 %v454
    %480 = vmatprep.subr.mxu0 0.0
    %481 = vmatpush1.msra.mxu0 %v455
    %482 = vmatprep.subr.mxu0 0.0
    %483 = vmatpush1.msra.mxu0 %v456
    %484 = vmatprep.subr.mxu0 0.0
    %485 = vmatpush1.msra.mxu0 %v457
    %486 = vmatprep.subr.mxu0 0.0
    %487 = vmatpush1.msra.mxu0 %v458
    %488 = vmatprep.subr.mxu0 0.0
    %489 = vmatpush1.msra.mxu0 %v459
    %490 = vmatprep.subr.mxu0 0.0
    %491 = vmatpush1.msra.mxu0 %v460
    %492 = vmatprep.subr.mxu0 0.0
    %493 = vmatpush1.msra.mxu0 %v461
    %494 = vmatprep.subr.mxu0 0.0
    %495 = vmatpush1.msra.mxu0 %v462
    %496 = vmatprep.subr.mxu0 0.0
    %497 = vmatpush1.msra.mxu0 %v463
    %498 = vmatprep.subr.mxu0 0.0
    %499 = vmatpush1.msra.mxu0 %v464
    %500 = vmatprep.subr.mxu0 0.0
    %501 = vmatpush1.msra.mxu0 %v465
    %502 = vmatprep.subr.mxu0 0.0
    %503 = vmatpush1.msra.mxu0 %v466
    %504 = vmatprep.subr.mxu0 0.0
    %505 = vmatpush1.msra.mxu0 %v467
    %506 = vmatprep.subr.mxu0 0.0
    %507 = vmatpush1.msra.mxu0 %v468
    %508 = vmatprep.subr.mxu0 0.0
    %509 = vmatpush1.msra.mxu0 0.0
    %510 = vmatprep.subr.mxu0 0.0
    %511 = vmatpush1.msra.mxu0 0.0
    %512 = vmatprep.subr.mxu0 0.0
    %513 = vmatpush1.msra.mxu0 0.0
    %514 = vmatprep.subr.mxu0 0.0
    %515 = vmatpush1.msra.mxu0 0.0
    %516 = vmatprep.subr.mxu0 0.0
    %517 = vmatpush1.msra.mxu0 0.0
    %518 = vmatprep.subr.mxu0 0.0
    %519 = vmatpush1.msra.mxu0 0.0
    %520 = vmatprep.subr.mxu0 0.0
    %521 = vmatpush1.msra.mxu0 0.0
    %522 = vmatprep.subr.mxu0 0.0
    %523 = vmatpush1.msra.mxu0 0.0
    %524 = vmatprep.subr.mxu0 0.0
    %525 = vmatpush1.msra.mxu0 0.0
    %526 = vmatprep.subr.mxu0 0.0
    %527 = vmatpush1.msra.mxu0 0.0
    %528 = vmatprep.subr.mxu0 0.0
    %529 = vmatpush1.msra.mxu0 0.0
    %530 = vmatprep.subr.mxu0 0.0
    %531 = vmatpush1.msra.mxu0 0.0
    %532 = vmatprep.subr.mxu0 0.0
    %533 = vmatpush1.msra.mxu0 0.0
    %534 = vmatprep.subr.mxu0 0.0
    %535 = vmatpush1.msra.mxu0 0.0
    %536 = vmatprep.subr.mxu0 0.0
    %537 = vmatpush1.msra.mxu0 0.0
    %538 = vmatprep.subr.mxu0 0.0
    %539 = vmatpush1.msra.mxu0 0.0
    %540 = vmatprep.mubr.f32.mxu0 0.0
    %541 = vmatmul.mubr.f32.gmra.mrb[0].mxu0 %v452
    %v542 = vpop.f32.mrb[0].mxu0
    %v543 = vadd.f32 %v474, %v542
    %v544 = vpop.f32.mrb[0].mxu0
    %545 = vdwg.mxu0
    %546 = vmax.xlane.f32.xlu0 %v543
    %v547 = vpop.xlane.xlu0 %546
    %v548 = vsub.f32 %v543, %v547
    %v549 = vmul.f32 %v548, 1.442695
    %v550 = vpow.pop %v549
    %551 = vadd.xlane.f32.xlu0 %v550
    %v552 = vpop.xlane.xlu0 %551
    %v553 = vlog2.pop %v552
    %v554 = vmul.f32 %v553, 0.6931472
    %v555 = vsub.f32 %v548, %v554
    %556 = vst [vmem:[#allocation8] sm:$0xff] %v555
    // Predicated region
    $region30: #{tpu_custom_call.1} parent=1 // pred_check
      _
    $region31: #{tpu_custom_call.1} parent=1 // pred_check_branch
      %558 = sbr.rel (0) target = $region33
    $region32: #{tpu_custom_call.1} parent=1 // pred_region
      %s560 = ssub.s32 128, 128
      %561 = vsyncadd [#allocation4], %s560
      %s563 = sshll.u32 [#allocation8], 4
      %s564 = int_to_ptr.vmem [resolvable:$true] %s563
      %566 = dma.vmem_to_hbm [thread:$0]  %s564, 128, %s4, [#allocation4]
    $region33: #{tpu_custom_call.1} parent=1 // pred_fallthru
      _
    // Predicated region
    $region34: #{tpu_custom_call.1} parent=1 // pred_check
      _
    $region35: #{tpu_custom_call.1} parent=1 // pred_check_branch
      %568 = sbr.rel (0) target = $region37
    $region36: #{tpu_custom_call.1} parent=1 // pred_region
      %569 = dma.done [#allocation4], 128
    $region37: #{tpu_custom_call.1} parent=1 // pred_fallthru
      _
    %570 = vsyncpa [#allocation3], 1
    %571 = vsyncpa [#allocation6], 1
    %572 = vsyncpa [#allocation4], 1

</llo_original>
